<compile_context>
chip_gen: v6e
topology: v6e:2x2x1
jax: 0.10.0
libtpu: 0.0.40
codegen_flags: <defaults>
</compile_context>

<pallas_src>
import numpy as np
import jax
import jax.numpy as jnp
from jax.experimental import pallas as pl
from jax.experimental.pallas import tpu as pltpu

EPS = 1e-5                      # nn.BatchNorm1d default
COMPUTE_DTYPE = jnp.bfloat16    # MXU operand / intermediate-storage dtype
_MIB = 1024 * 1024


# ---------------------------------------------------------------------------
# helpers
# ---------------------------------------------------------------------------
def _round_up(x, m):
    return ((x + m - 1) // m) * m


def _largest_divisor(total, candidates):
    for c in candidates:
        if total % c == 0:
            return c
    return None


def _largest_leq(total, candidates):
    for c in candidates:
        if c <= total:
            return c
    return total


def _vmem_limit_bytes(blocks):
    """blocks: iterable of (block_shape, dtype); assumes double-buffering."""
    need = 0
    for shape, dtype in blocks:
        n = 1
        for d in shape:
            n *= int(d)
        need += 2 * n * np.dtype(dtype).itemsize
    # 2x headroom + 4 MiB slack; clamp to [32 MiB, 64 MiB], which is above
    # v5e's 16 MiB default yet safe on every chip (v7x physical VMEM = 64 MiB).
    return int(min(max(2 * need + 4 * _MIB, 32 * _MIB), 64 * _MIB))


# ---------------------------------------------------------------------------
# K1: y = elu(x) ; Ly = L @ y ; fused per-feature [sum, sumsq] stats
#     grid = (batch, node-row tiles), both sequential (resident accumulators)
# ---------------------------------------------------------------------------
def _elu_lap_stats_kernel(x_ref, l_ref, y_ref, ly_ref, sy_ref, sl_ref):
    b = pl.program_id(0)
    r = pl.program_id(1)

    x = x_ref[0].astype(jnp.float32)                          # (N, F)
    # ELU(alpha=1); clamp the exp arg so the unselected branch stays finite.
    y32 = jnp.where(x > 0.0, x, jnp.exp(jnp.minimum(x, 0.0)) - 1.0)
    y = y32.astype(y_ref.dtype)                               # bf16 storage value

    # Row tile of L @ y on the MXU (bf16 operands, f32 accumulation).
    ly32 = jnp.dot(l_ref[0], y, preferred_element_type=jnp.float32)   # (TN, F)
    ly = ly32.astype(ly_ref.dtype)
    ly_ref[0] = ly

    @pl.when(jnp.logical_and(b == 0, r == 0))
    def _init():
        sy_ref[...] = jnp.zeros_like(sy_ref)
        sl_ref[...] = jnp.zeros_like(sl_ref)

    # y (and its stats) are resident across the node-row axis: once per batch.
    # Stats are taken from the bf16-rounded values K2 will actually consume.
    @pl.when(r == 0)
    def _y_once():
        y_ref[0] = y
        yf = y.astype(jnp.float32)
        sy_ref[...] += jnp.concatenate(
            [jnp.sum(yf, axis=0, keepdims=True),
             jnp.sum(yf * yf, axis=0, keepdims=True)], axis=0)

    lf = ly.astype(jnp.float32)
    sl_ref[...] += jnp.concatenate(
        [jnp.sum(lf, axis=0, keepdims=True),
         jnp.sum(lf * lf, axis=0, keepdims=True)], axis=0)


def _elu_lap_stats(x, L):
    """x: (B, N, F); L: (B, N, N) pre-cast to the compute dtype.

    Returns y=elu(x), Ly=L@y (both in L.dtype) and (2, F) [sum; sumsq] stats for
    y and Ly, all produced in a single pass over HBM.
    """
    B, N, F = x.shape
    cdt = L.dtype
    # Node-row tiling keeps the L block bounded (mandatory for big N on v7x).
    TN = _largest_divisor(N, (1024, 512, 256, 128)) or N
    # TODO(synk): for very large N with no nice divisor, pad N instead of
    #             falling back to a full-N L block.

    blocks = [((TN, N), cdt), ((N, F), x.dtype), ((N, F), cdt), ((TN, F), cdt),
              ((2, F), jnp.float32), ((2, F), jnp.float32)]

    return pl.pallas_call(
        _elu_lap_stats_kernel,
        out_shape=(jax.ShapeDtypeStruct((B, N, F), cdt),
                   jax.ShapeDtypeStruct((B, N, F), cdt),
                   jax.ShapeDtypeStruct((2, F), jnp.float32),
                   jax.ShapeDtypeStruct((2, F), jnp.float32)),
        grid_spec=pltpu.PrefetchScalarGridSpec(
            num_scalar_prefetch=0,
            grid=(B, N // TN),
            in_specs=[
                pl.BlockSpec((1, N, F), lambda b, r: (b, 0, 0)),    # x (row-resident)
                pl.BlockSpec((1, TN, N), lambda b, r: (b, r, 0)),   # L row tile
            ],
            out_specs=[
                pl.BlockSpec((1, N, F), lambda b, r: (b, 0, 0)),    # y
                pl.BlockSpec((1, TN, F), lambda b, r: (b, r, 0)),   # L @ y
                pl.BlockSpec((2, F), lambda b, r: (0, 0)),          # y stats (resident)
                pl.BlockSpec((2, F), lambda b, r: (0, 0)),          # Ly stats (resident)
            ],
        ),
        compiler_params=pltpu.CompilerParams(
            dimension_semantics=("arbitrary", "arbitrary"),
            vmem_limit_bytes=_vmem_limit_bytes(blocks)),
    )(x, L)


# ---------------------------------------------------------------------------
# K2: fused (folded-BN) linear:  out = y @ A1 + Ly @ A2 + c  [+ residual]
#     lane-dense (Fo padded to a multiple of 128) output stores
# ---------------------------------------------------------------------------
def _fused_linear_kernel(y_ref, ly_ref, a1_ref, a2_ref, c_ref, o_ref):
    acc = jnp.dot(y_ref[...], a1_ref[...], preferred_element_type=jnp.float32)
    acc = acc + jnp.dot(ly_ref[...], a2_ref[...], preferred_element_type=jnp.float32)
    acc = acc + c_ref[...]
    o_ref[...] = acc.astype(o_ref.dtype)


def _fused_linear_res_kernel(y_ref, ly_ref, a1_ref, a2_ref, c_ref, r_ref, o_ref):
    acc = jnp.dot(y_ref[...], a1_ref[...], preferred_element_type=jnp.float32)
    acc = acc + jnp.dot(ly_ref[...], a2_ref[...], preferred_element_type=jnp.float32)
    acc = acc + c_ref[...]
    acc = acc + r_ref[...].astype(jnp.float32)
    o_ref[...] = acc.astype(o_ref.dtype)


def _fused_linear(y2d, ly2d, a1, a2, c, residual2d=None, out_dtype=jnp.float32):
    """Row-tiled  y2d @ a1 + ly2d @ a2 + c (+ residual)  with padded lane-dense out."""
    M, F = y2d.shape
    Fo_pad = a1.shape[1]

    # Large row tiles; pad M when nothing divides it (no full-extent fallback).
    TR = _largest_leq(M, (2048, 1024, 512, 256, 128, 64, 32, 16, 8))
    M_pad = _round_up(M, TR)
    if M_pad != M:
        rpad = ((0, M_pad - M), (0, 0))
        y2d = jnp.pad(y2d, rpad)
        ly2d = jnp.pad(ly2d, rpad)

    in_specs = [
        pl.BlockSpec((TR, F), lambda i: (i, 0)),
        pl.BlockSpec((TR, F), lambda i: (i, 0)),
        pl.BlockSpec((F, Fo_pad), lambda i: (0, 0)),
        pl.BlockSpec((F, Fo_pad), lambda i: (0, 0)),
        pl.BlockSpec((1, Fo_pad), lambda i: (0, 0)),
    ]
    args = [y2d, ly2d, a1, a2, c]
    blocks = [((TR, F), y2d.dtype), ((TR, F), ly2d.dtype),
              ((F, Fo_pad), a1.dtype), ((F, Fo_pad), a2.dtype),
              ((1, Fo_pad), c.dtype), ((TR, Fo_pad), out_dtype)]
    kernel = _fused_linear_kernel
    if residual2d is not None:
        Fo = residual2d.shape[1]
        residual2d = jnp.pad(residual2d, ((0, M_pad - M), (0, Fo_pad - Fo)))
        in_specs.append(pl.BlockSpec((TR, Fo_pad), lambda i: (i, 0)))
        args.append(residual2d)
        blocks.append(((TR, Fo_pad), residual2d.dtype))
        kernel = _fused_linear_res_kernel

    out = pl.pallas_call(
        kernel,
        out_shape=jax.ShapeDtypeStruct((M_pad, Fo_pad), out_dtype),
        grid_spec=pltpu.PrefetchScalarGridSpec(
            num_scalar_prefetch=0,
            grid=(M_pad // TR,),
            in_specs=in_specs,
            out_specs=pl.BlockSpec((TR, Fo_pad), lambda i: (i, 0)),
        ),
        compiler_params=pltpu.CompilerParams(
            dimension_semantics=("parallel",),
            vmem_limit_bytes=_vmem_limit_bytes(blocks)),
    )(*args)
    return out[:M]


# ---------------------------------------------------------------------------
# LapResNet2 forward
# ---------------------------------------------------------------------------
def _graph_conv_block(x, L, gamma, beta, W, b, residual=None):
    """elu -> [y, L@y] -> BatchNorm(train, 'pre') -> Linear(2F->Fo) (+ residual)."""
    B, N, F = x.shape
    M = B * N

    y, ly, st_y, st_l = _elu_lap_stats(x, L)

    # Tiny (2F,)-sized BN folding in plain JAX; divide by the GLOBAL M.
    sums = jnp.concatenate([st_y[0], st_l[0]])               # (2F,)
    sumsq = jnp.concatenate([st_y[1], st_l[1]])              # (2F,)
    mean = sums / M
    var = jnp.maximum(sumsq / M - mean * mean, 0.0)          # biased var, clamped
    inv_std = jax.lax.rsqrt(var + EPS)
    scale = gamma.astype(jnp.float32) * inv_std
    shift = beta.astype(jnp.float32) - mean * scale

    w32 = W.astype(jnp.float32)                              # (Fo, 2F)
    ws = w32 * scale[None, :]
    Fo = w32.shape[0]
    Fo_pad = max(_round_up(Fo, 128), 128)                    # lane-dense output
    cpad = ((0, 0), (0, Fo_pad - Fo))
    a1 = jnp.pad(ws[:, :F].T, cpad).astype(y.dtype)          # (F, Fo_pad) "y" half
    a2 = jnp.pad(ws[:, F:].T, cpad).astype(y.dtype)          # (F, Fo_pad) "L@y" half
    c = jnp.pad((shift @ w32.T + b.astype(jnp.float32))[None, :], cpad)

    res2d = None if residual is None else residual.reshape(M, Fo)
    out2d = _fused_linear(y.reshape(M, F), ly.reshape(M, F), a1, a2, c,
                          res2d, out_dtype=x.dtype)
    return out2d[:, :Fo].reshape(B, N, Fo)


@jax.jit
def lap_resnet2_forward(L, mask, inputs, params):
    """LapResNet2.forward for dense L. `mask` is unused (as in the torch module)."""
    del mask
    L_cd = L.astype(COMPUTE_DTYPE)          # cast once; reused by both blocks
    h = _graph_conv_block(inputs, L_cd, params["gamma0"], params["beta0"],
                          params["W0"], params["b0"])
    out = _graph_conv_block(h, L_cd, params["gamma1"], params["beta1"],
                            params["W1"], params["b1"], residual=inputs)
    return out


# ---------------------------------------------------------------------------
# Pure-JAX reference (direct translation of the torch forward, f32 HIGHEST)
# ---------------------------------------------------------------------------
def _reference(L, mask, inputs, params):
    del mask
    hp = jax.lax.Precision.HIGHEST

    def elu(v):
        return jnp.where(v > 0.0, v, jnp.exp(jnp.minimum(v, 0.0)) - 1.0)

    def bn(z, gamma, beta):
        B, N, C = z.shape
        z2 = z.reshape(B * N, C).astype(jnp.float32)
        mean = jnp.mean(z2, axis=0, keepdims=True)
        var = jnp.mean((z2 - mean) ** 2, axis=0, keepdims=True)
        zn = (z2 - mean) * jax.lax.rsqrt(var + EPS)
        zn = zn * gamma[None, :] + beta[None, :]
        return zn.reshape(B, N, C)

    def conv1x1_pre(z, gamma, beta, W, b):
        z = bn(z, gamma, beta)
        return jnp.einsum("bnc,oc->bno", z, W, precision=hp) + b[None, None, :]

    x = elu(inputs)
    x = jnp.concatenate([x, jnp.einsum("bij,bjf->bif", L, x, precision=hp)], axis=2)
    x = conv1x1_pre(x, params["gamma0"], params["beta0"], params["W0"], params["b0"])
    x = elu(x)
    x = jnp.concatenate([x, jnp.einsum("bij,bjf->bif", L, x, precision=hp)], axis=2)
    x = conv1x1_pre(x, params["gamma1"], params["beta1"], params["W1"], params["b1"])
    return x + inputs


if __name__ == "__main__":
    key = jax.random.PRNGKey(0)
    ks = jax.random.split(key, 10)

    batch, num_nodes, num_outputs = 2, 16, 32
    F = num_outputs

    inputs = jax.random.normal(ks[0], (batch, num_nodes, F), jnp.float32)
    # Dense per-batch graph operator (the torch.strided / bmm branch).
    L = 0.1 * jax.random.normal(ks[1], (batch, num_nodes, num_nodes), jnp.float32)
    mask = jnp.ones((batch, num_nodes, 1), jnp.float32)   # unused by the forward

    def lin_init(k, fan_in, shape):
        bound = 1.0 / (fan_in ** 0.5)
        return jax.random.uniform(k, shape, jnp.float32, -bound, bound)

    params = {
        # BatchNorm affine params (torch defaults are ones/zeros; perturbed so
        # the affine path is actually exercised).
        "gamma0": 1.0 + 0.1 * jax.random.normal(ks[2], (2 * F,), jnp.float32),
        "beta0": 0.1 * jax.random.normal(ks[3], (2 * F,), jnp.float32),
        "W0": lin_init(ks[4], 2 * F, (F, 2 * F)),
        "b0": lin_init(ks[5], 2 * F, (F,)),
        "gamma1": 1.0 + 0.1 * jax.random.normal(ks[6], (2 * F,), jnp.float32),
        "beta1": 0.1 * jax.random.normal(ks[7], (2 * F,), jnp.float32),
        "W1": lin_init(ks[8], 2 * F, (F, 2 * F)),
        "b1": lin_init(ks[9], 2 * F, (F,)),
    }

    # Tight standalone check of the fused stats accumulator: the kernel's sums
    # must match sums of its own (bf16-rounded) y / L@y outputs.
    y_dbg, ly_dbg, sy_dbg, sl_dbg = _elu_lap_stats(inputs, L.astype(COMPUTE_DTYPE))
    jax.block_until_ready(sy_dbg)
    y2 = y_dbg.astype(jnp.float32).reshape(-1, F)
    l2 = ly_dbg.astype(jnp.float32).reshape(-1, F)
    sy_ref = jnp.stack([jnp.sum(y2, axis=0), jnp.sum(y2 * y2, axis=0)])
    sl_ref = jnp.stack([jnp.sum(l2, axis=0), jnp.sum(l2 * l2, axis=0)])
    assert jnp.allclose(sy_dbg, sy_ref, atol=1e-3, rtol=1e-3), "y stats mismatch"
    assert jnp.allclose(sl_dbg, sl_ref, atol=1e-3, rtol=1e-3), "L@y stats mismatch"

    out = lap_resnet2_forward(L, mask, inputs, params)
    out = jax.block_until_ready(out)
    assert out.shape == (batch, num_nodes, F)

    ref = _reference(L, mask, inputs, params)
    # Tolerance budget: the kernel stores intermediates and feeds the MXU in
    # bfloat16 (f32 accumulation) while the reference is HIGHEST-precision f32;
    # the compounded rounding across two blocks is O(1e-2).  Structural bugs
    # (wrong BN folding, missing bias/residual, wrong mean divisor) would be
    # O(0.1 - 1) and are still caught.
    max_err = float(jnp.max(jnp.abs(out - ref)))
    assert jnp.allclose(out, ref, atol=8e-2, rtol=8e-2), (
        f"mismatch vs reference: max abs err = {max_err}")

    print("KERNEL_OK")
</pallas_src>

<mosaic_0001>
module attributes {stable_mosaic.version = 11 : i64} {
  func.func @_elu_lap_stats_kernel(%arg0: i32, %arg1: i32, %arg2: memref<1x16x32xf32, #tpu.memory_space<vmem>>, %arg3: memref<1x16x16xbf16, #tpu.memory_space<vmem>>, %arg4: memref<1x16x32xbf16, #tpu.memory_space<vmem>>, %arg5: memref<1x16x32xbf16, #tpu.memory_space<vmem>>, %arg6: memref<2x32xf32, #tpu.memory_space<vmem>>, %arg7: memref<2x32xf32, #tpu.memory_space<vmem>>) attributes {dimension_semantics = [#tpu.dimension_semantics<arbitrary>, #tpu.dimension_semantics<arbitrary>], iteration_bounds = array<i64: 2, 1>, scalar_prefetch = 0 : i64, scratch_operands = 0 : i64, tpu.core_type = #tpu.core_type<tc>, window_params = [{transform_indices = @transform_0, window_bounds = array<i64: 1, 16, 32>}, {transform_indices = @transform_1, window_bounds = array<i64: 1, 16, 16>}, {transform_indices = @transform_2, window_bounds = array<i64: 1, 16, 32>}, {transform_indices = @transform_3, window_bounds = array<i64: 1, 16, 32>}, {pipeline_mode = #tpu.pipeline_mode<synchronous>, transform_indices = @transform_4, window_bounds = array<i64: 2, 32>}, {pipeline_mode = #tpu.pipeline_mode<synchronous>, transform_indices = @transform_5, window_bounds = array<i64: 2, 32>}]} {
    %c0 = arith.constant 0 : index
    %c0_0 = arith.constant 0 : index
    %c0_1 = arith.constant 0 : index
    %0 = vector.load %arg2[%c0, %c0_0, %c0_1] : memref<1x16x32xf32, #tpu.memory_space<vmem>>, vector<1x16x32xf32>
    %1 = vector.shape_cast %0 : vector<1x16x32xf32> to vector<16x32xf32>
    %cst = arith.constant 0.000000e+00 : f32
    %2 = vector.broadcast %cst : f32 to vector<16x32xf32>
    %3 = arith.cmpf ogt, %1, %2 : vector<16x32xf32>
    %cst_2 = arith.constant 0.000000e+00 : f32
    %4 = vector.broadcast %cst_2 : f32 to vector<16x32xf32>
    %5 = arith.minimumf %1, %4 : vector<16x32xf32>
    %6 = math.exp %5 : vector<16x32xf32>
    %cst_3 = arith.constant 1.000000e+00 : f32
    %7 = vector.broadcast %cst_3 : f32 to vector<16x32xf32>
    %8 = arith.subf %6, %7 : vector<16x32xf32>
    %9 = arith.select %3, %1, %8 : vector<16x32xi1>, vector<16x32xf32>
    %10 = arith.truncf %9 : vector<16x32xf32> to vector<16x32xbf16>
    %c0_4 = arith.constant 0 : index
    %c0_5 = arith.constant 0 : index
    %c0_6 = arith.constant 0 : index
    %11 = vector.load %arg3[%c0_4, %c0_5, %c0_6] : memref<1x16x16xbf16, #tpu.memory_space<vmem>>, vector<1x16x16xbf16>
    %12 = vector.shape_cast %11 : vector<1x16x16xbf16> to vector<16x16xbf16>
    %cst_7 = arith.constant dense<0.000000e+00> : vector<16x32xf32>
    %13 = tpu.matmul %12, %10, %cst_7 {dimension_numbers = #tpu.dot_dimension_numbers<[1], [0], [0], [1], [0, 0, 1, 1], [], []>} : vector<16x16xbf16>, vector<16x32xbf16>, vector<16x32xf32> -> vector<16x32xf32>
    %14 = arith.truncf %13 : vector<16x32xf32> to vector<16x32xbf16>
    %c0_8 = arith.constant 0 : index
    %c0_9 = arith.constant 0 : index
    %c0_10 = arith.constant 0 : index
    %15 = vector.load %arg5[%c0_8, %c0_9, %c0_10] : memref<1x16x32xbf16, #tpu.memory_space<vmem>>, vector<1x16x32xbf16>
    %16 = vector.shape_cast %15 : vector<1x16x32xbf16> to vector<16x32xbf16>
    %17 = vector.shape_cast %14 : vector<16x32xbf16> to vector<1x16x32xbf16>
    tpu.vector_store %arg5[%c0_8, %c0_9, %c0_10], %17 {strides = array<i32>} : memref<1x16x32xbf16, #tpu.memory_space<vmem>>, vector<1x16x32xbf16>,
    %c0_i32 = arith.constant 0 : i32
    %18 = arith.cmpi eq, %arg0, %c0_i32 : i32
    %c0_i32_11 = arith.constant 0 : i32
    %19 = arith.cmpi eq, %arg1, %c0_i32_11 : i32
    %20 = arith.andi %18, %19 : i1
    %21 = arith.extui %20 : i1 to i32
    %c0_i32_12 = arith.constant 0 : i32
    %22 = arith.cmpi ne, %21, %c0_i32_12 : i32
    scf.if %22 {
      %cst_21 = arith.constant 0.000000e+00 : f32
      %36 = vector.broadcast %cst_21 : f32 to vector<2x32xf32>
      %c0_22 = arith.constant 0 : index
      %c0_23 = arith.constant 0 : index
      %37 = vector.load %arg6[%c0_22, %c0_23] : memref<2x32xf32, #tpu.memory_space<vmem>>, vector<2x32xf32>
      tpu.vector_store %arg6[%c0_22, %c0_23], %36 {strides = array<i32>} : memref<2x32xf32, #tpu.memory_space<vmem>>, vector<2x32xf32>,
      %cst_24 = arith.constant 0.000000e+00 : f32
      %38 = vector.broadcast %cst_24 : f32 to vector<2x32xf32>
      %c0_25 = arith.constant 0 : index
      %c0_26 = arith.constant 0 : index
      %39 = vector.load %arg7[%c0_25, %c0_26] : memref<2x32xf32, #tpu.memory_space<vmem>>, vector<2x32xf32>
      tpu.vector_store %arg7[%c0_25, %c0_26], %38 {strides = array<i32>} : memref<2x32xf32, #tpu.memory_space<vmem>>, vector<2x32xf32>,
    } else {
    }
    %c0_i32_13 = arith.constant 0 : i32
    %23 = arith.cmpi eq, %arg1, %c0_i32_13 : i32
    %24 = arith.extui %23 : i1 to i32
    %c0_i32_14 = arith.constant 0 : i32
    %25 = arith.cmpi ne, %24, %c0_i32_14 : i32
    scf.if %25 {
      %c0_21 = arith.constant 0 : index
      %c0_22 = arith.constant 0 : index
      %c0_23 = arith.constant 0 : index
      %36 = vector.load %arg4[%c0_21, %c0_22, %c0_23] : memref<1x16x32xbf16, #tpu.memory_space<vmem>>, vector<1x16x32xbf16>
      %37 = vector.shape_cast %36 : vector<1x16x32xbf16> to vector<16x32xbf16>
      %38 = vector.shape_cast %10 : vector<16x32xbf16> to vector<1x16x32xbf16>
      tpu.vector_store %arg4[%c0_21, %c0_22, %c0_23], %38 {strides = array<i32>} : memref<1x16x32xbf16, #tpu.memory_space<vmem>>, vector<1x16x32xbf16>,
      %39 = arith.extf %10 : vector<16x32xbf16> to vector<16x32xf32>
      %c0_24 = arith.constant 0 : index
      %c0_25 = arith.constant 0 : index
      %40 = vector.load %arg6[%c0_24, %c0_25] : memref<2x32xf32, #tpu.memory_space<vmem>>, vector<2x32xf32>
      %cst_26 = arith.constant dense<0.000000e+00> : vector<32xf32>
      %41 = vector.multi_reduction <add>, %39, %cst_26 [0] : vector<16x32xf32> to vector<32xf32>
      %42 = vector.shape_cast %41 : vector<32xf32> to vector<1x32xf32>
      %43 = arith.mulf %39, %39 : vector<16x32xf32>
      %cst_27 = arith.constant dense<0.000000e+00> : vector<32xf32>
      %44 = vector.multi_reduction <add>, %43, %cst_27 [0] : vector<16x32xf32> to vector<32xf32>
      %45 = vector.shape_cast %44 : vector<32xf32> to vector<1x32xf32>
      %46 = tpu.concatenate %42, %45 in 0 : vector<1x32xf32>, vector<1x32xf32> -> vector<2x32xf32>
      %47 = arith.addf %40, %46 : vector<2x32xf32>
      %c0_28 = arith.constant 0 : index
      %c0_29 = arith.constant 0 : index
      %48 = vector.load %arg6[%c0_28, %c0_29] : memref<2x32xf32, #tpu.memory_space<vmem>>, vector<2x32xf32>
      tpu.vector_store %arg6[%c0_28, %c0_29], %47 {strides = array<i32>} : memref<2x32xf32, #tpu.memory_space<vmem>>, vector<2x32xf32>,
    } else {
    }
    %26 = arith.extf %14 : vector<16x32xbf16> to vector<16x32xf32>
    %c0_15 = arith.constant 0 : index
    %c0_16 = arith.constant 0 : index
    %27 = vector.load %arg7[%c0_15, %c0_16] : memref<2x32xf32, #tpu.memory_space<vmem>>, vector<2x32xf32>
    %cst_17 = arith.constant dense<0.000000e+00> : vector<32xf32>
    %28 = vector.multi_reduction <add>, %26, %cst_17 [0] : vector<16x32xf32> to vector<32xf32>
    %29 = vector.shape_cast %28 : vector<32xf32> to vector<1x32xf32>
    %30 = arith.mulf %26, %26 : vector<16x32xf32>
    %cst_18 = arith.constant dense<0.000000e+00> : vector<32xf32>
    %31 = vector.multi_reduction <add>, %30, %cst_18 [0] : vector<16x32xf32> to vector<32xf32>
    %32 = vector.shape_cast %31 : vector<32xf32> to vector<1x32xf32>
    %33 = tpu.concatenate %29, %32 in 0 : vector<1x32xf32>, vector<1x32xf32> -> vector<2x32xf32>
    %34 = arith.addf %27, %33 : vector<2x32xf32>
    %c0_19 = arith.constant 0 : index
    %c0_20 = arith.constant 0 : index
    %35 = vector.load %arg7[%c0_19, %c0_20] : memref<2x32xf32, #tpu.memory_space<vmem>>, vector<2x32xf32>
    tpu.vector_store %arg7[%c0_19, %c0_20], %34 {strides = array<i32>} : memref<2x32xf32, #tpu.memory_space<vmem>>, vector<2x32xf32>,
    return
  }
  func.func @transform_0(%arg0: i32, %arg1: i32) -> (i32, i32, i32) {
    %c0_i32 = arith.constant 0 : i32
    %c0_i32_0 = arith.constant 0 : i32
    %c0_i32_1 = arith.constant 0 : i32
    return %arg0, %c0_i32, %c0_i32_0 : i32, i32, i32
  }
  func.func @transform_1(%arg0: i32, %arg1: i32) -> (i32, i32, i32) {
    %c0_i32 = arith.constant 0 : i32
    %c0_i32_0 = arith.constant 0 : i32
    return %arg0, %arg1, %c0_i32 : i32, i32, i32
  }
  func.func @transform_2(%arg0: i32, %arg1: i32) -> (i32, i32, i32) {
    %c0_i32 = arith.constant 0 : i32
    %c0_i32_0 = arith.constant 0 : i32
    %c0_i32_1 = arith.constant 0 : i32
    return %arg0, %c0_i32, %c0_i32_0 : i32, i32, i32
  }
  func.func @transform_3(%arg0: i32, %arg1: i32) -> (i32, i32, i32) {
    %c0_i32 = arith.constant 0 : i32
    %c0_i32_0 = arith.constant 0 : i32
    return %arg0, %arg1, %c0_i32 : i32, i32, i32
  }
  func.func @transform_4(%arg0: i32, %arg1: i32) -> (i32, i32) {
    %c0_i32 = arith.constant 0 : i32
    %c0_i32_0 = arith.constant 0 : i32
    %c0_i32_1 = arith.constant 0 : i32
    return %c0_i32, %c0_i32_0 : i32, i32
  }
  func.func @transform_5(%arg0: i32, %arg1: i32) -> (i32, i32) {
    %c0_i32 = arith.constant 0 : i32
    %c0_i32_0 = arith.constant 0 : i32
    %c0_i32_1 = arith.constant 0 : i32
    return %c0_i32, %c0_i32_0 : i32, i32
  }
}

</mosaic_0001>

<llo_original>
// kernel: tpu_custom_call.1
$region0: #{tpu_custom_call.1}
  #allocation0 [shape = 'u32[]', space=smem, size = 0x4, offset = 0x4, fixed_abs, tag = 'smem constant byte address 0x4 - core index']
  #allocation1 [shape = 'u32[144,128]{1,0:T(1,128)}', space=vmem, size = 0x12000, scoped, tag = 'internal scratch']
  %s0 = inlined_call_operand.hbm [shape: f32[2,16,32], index: 0, kind: input, shape index: {}]
  %s1 = inlined_call_operand.hbm [shape: bf16[2,16,16], index: 1, kind: input, shape index: {}]
  %s2 = inlined_call_operand.hbm [shape: bf16[2,16,32], index: 2, kind: output, shape index: {0}]
  %s3 = inlined_call_operand.hbm [shape: bf16[2,16,32], index: 3, kind: output, shape index: {1}]
  %s4 = inlined_call_operand.hbm [shape: f32[2,32], index: 4, kind: output, shape index: {2}]
  %s5 = inlined_call_operand.hbm [shape: f32[2,32], index: 5, kind: output, shape index: {3}]
  %6 = xla_tuple %s2, %s3, %s4, %s5
  %s7 = sld [smem:[#allocation0]]
  $region81: #{tpu_custom_call.1} parent=0
    _
  %s9 = ssub.s32 1, %s7
  %s10 = scalar_select 0, %s9, %s7
  $region1: #{tpu_custom_call.1} parent=0
    #allocation2 [shape = 'u8[16384]{0}', space=vmem, size = 0x4000, scoped, tag = 'input window, operand 0']
    #allocation3 [shape = 's32[2]{0}', space=sflag, size = 0x8, scoped, tag = 'scoped memory for tpu_custom_call.1']
    #allocation4 [shape = 's32[2]{0}', space=sflag, size = 0x8, scoped, tag = 'scoped memory for tpu_custom_call.1']
    #allocation5 [shape = 'u8[8192]{0}', space=vmem, size = 0x2000, scoped, tag = 'input window, operand 1']
    #allocation6 [shape = 's32[2]{0}', space=sflag, size = 0x8, scoped, tag = 'scoped memory for tpu_custom_call.1']
    #allocation7 [shape = 'u8[8192]{0}', space=vmem, size = 0x2000, scoped, tag = 'output window, operand 0']
    #allocation8 [shape = 'u8[8192]{0}', space=vmem, size = 0x2000, scoped, tag = 'output window, operand 1']
    #allocation9 [shape = 's32[2]{0}', space=sflag, size = 0x8, scoped, tag = 'scoped memory for tpu_custom_call.1']
    #allocation10 [shape = 'u8[1024]{0}', space=vmem, size = 0x400, scoped, tag = 'output window, operand 2, single buffered']
    #allocation11 [shape = 'u8[1024]{0}', space=vmem, size = 0x400, scoped, tag = 'output window, operand 3, single buffered']
    #allocation12 [shape = 's32[1]{0}', space=sflag, size = 0x4, scoped, tag = 'scoped memory for tpu_custom_call.1']
    %11 = vsyncpa [#allocation3], 0
    %s12 = scalar_lea.sflag [#allocation3], 1
    %13 = vsyncpa %s12, 0
    %14 = vsyncpa [#allocation6], 0
    %s15 = scalar_lea.sflag [#allocation6], 1
    %16 = vsyncpa %s15, 0
    %17 = vsyncpa [#allocation4], 0
    %s18 = scalar_lea.sflag [#allocation4], 1
    %19 = vsyncpa %s18, 0
    %20 = vsyncpa [#allocation9], 0
    %s21 = scalar_lea.sflag [#allocation9], 1
    %22 = vsyncpa %s21, 0
    %23 = vsyncpa [#allocation12], 0
    loop: start=0, step=1, limit=4
    $region2: #{tpu_custom_call.1} parent=1 // loop_pre_header
      _
    $region3: #{tpu_custom_call.1} parent=1 // loop_header
      %s25 = sphi 0, %s29
      %p26 = scmp.ge.s32.totalorder %s25, 4
      %s32 = sphi 0, %s44
      %s33 = sphi 0, %s40
      %s34 = sphi 0, %s32
      %s35 = sphi 0, %s33
      %s36 = sphi 0, %s34
      %s37 = sphi 0, %s35
      %s47 = sphi 0, %s49
      %s50 = sphi 0, %s47
      %s51 = sphi 0, %s50
      %s67 = sphi 0, %s51
      %s75 = sphi 0, %s77
      %s78 = sphi 0, %s75
      %s79 = sphi 0, %s78
      %s95 = sphi 0, %s79
      %s101 = sphi 0, %s103
      %s104 = sphi 0, %s101
      %s105 = sphi 0, %s104
      %s121 = sphi 0, %s105
      %s129 = sphi 0, %s131
      %s132 = sphi 0, %s129
      %s133 = sphi 0, %s132
      %s149 = sphi 0, %s133
      %s153 = sphi 0, %s153
      %s155 = sphi 0, %s153
      %s156 = sphi 0, %s155
      %s170 = sphi 0, %s156
      %s174 = sphi 0, %s174
      %s176 = sphi 0, %s174
      %s177 = sphi 0, %s176
      %s191 = sphi 0, %s177
    $region4: #{tpu_custom_call.1} parent=1 // loop_header_branch
      %28 = sbr.rel (%p26) target = $region8
    $region5: #{tpu_custom_call.1} parent=1 // loop_body
      %s30 = ssub.s32 %s25, 1
      %s31 = ssub.s32 %s25, 2
      %s38 = sadd.s32 1, %s33
      %p39 = scmp.ge.s32.totalorder %s38, 1
      %s40 = scalar_select %p39, 0, %s38
      %s41 = sadd.s32 1, %s32
      %s42 = scalar_select %p39, %s41, %s32
      %p43 = scmp.ge.s32.totalorder %s42, 2
      %s44 = scalar_select %p43, 0, %s42
      %s45 = ssub.s32 %s32, %s44
      %p46 = scmp.eq.s32.totalorder %s45, 0
      %s48 = sadd.s32 %s47, 1
      %s49 = scalar_select %p46, %s47, %s48
      %p52 = pneg %p46
      %p53 = scmp.eq.s32.totalorder %s25, 1
      %p54 = por %p52, %p53
      %p55 = scmp.ne.s32.totalorder %s47, %s50
      %p56 = scmp.eq.s32.totalorder %s25, 0
      %p57 = por %p55, %p56
      %p58 = scmp.ne.s32.totalorder %s47, %s50
      %p59 = scmp.eq.s32.totalorder %s30, 1
      %p60 = por %p58, %p59
      %p61 = scmp.ne.s32.totalorder %s50, %s51
      %p62 = scmp.eq.s32.totalorder %s30, 0
      %p63 = por %p61, %p62
      %p64 = scmp.ne.s32.totalorder %s50, %s51
      %p65 = scmp.eq.s32.totalorder %s31, 1
      %p66 = por %p64, %p65
      %p68 = scmp.ne.s32.totalorder %s51, %s67
      %p69 = scmp.eq.s32.totalorder %s31, 0
      %p70 = por %p68, %p69
      %s71 = ssub.s32 %s32, %s44
      %s72 = ssub.s32 %s33, %s40
      %s73 = sor.u32 %s71, %s72
      %p74 = scmp.eq.s32.totalorder %s73, 0
      %s76 = sadd.s32 %s75, 1
      %s77 = scalar_select %p74, %s75, %s76
      %p80 = pneg %p74
      %p81 = scmp.eq.s32.totalorder %s25, 1
      %p82 = por %p80, %p81
      %p83 = scmp.ne.s32.totalorder %s75, %s78
      %p84 = scmp.eq.s32.totalorder %s25, 0
      %p85 = por %p83, %p84
      %p86 = scmp.ne.s32.totalorder %s75, %s78
      %p87 = scmp.eq.s32.totalorder %s30, 1
      %p88 = por %p86, %p87
      %p89 = scmp.ne.s32.totalorder %s78, %s79
      %p90 = scmp.eq.s32.totalorder %s30, 0
      %p91 = por %p89, %p90
      %p92 = scmp.ne.s32.totalorder %s78, %s79
      %p93 = scmp.eq.s32.totalorder %s31, 1
      %p94 = por %p92, %p93
      %p96 = scmp.ne.s32.totalorder %s79, %s95
      %p97 = scmp.eq.s32.totalorder %s31, 0
      %p98 = por %p96, %p97
      %s99 = ssub.s32 %s32, %s44
      %p100 = scmp.eq.s32.totalorder %s99, 0
      %s102 = sadd.s32 %s101, 1
      %s103 = scalar_select %p100, %s101, %s102
      %p106 = pneg %p100
      %p107 = scmp.eq.s32.totalorder %s25, 1
      %p108 = por %p106, %p107
      %p109 = scmp.ne.s32.totalorder %s101, %s104
      %p110 = scmp.eq.s32.totalorder %s25, 0
      %p111 = por %p109, %p110
      %p112 = scmp.ne.s32.totalorder %s101, %s104
      %p113 = scmp.eq.s32.totalorder %s30, 1
      %p114 = por %p112, %p113
      %p115 = scmp.ne.s32.totalorder %s104, %s105
      %p116 = scmp.eq.s32.totalorder %s30, 0
      %p117 = por %p115, %p116
      %p118 = scmp.ne.s32.totalorder %s104, %s105
      %p119 = scmp.eq.s32.totalorder %s31, 1
      %p120 = por %p118, %p119
      %p122 = scmp.ne.s32.totalorder %s105, %s121
      %p123 = scmp.eq.s32.totalorder %s31, 0
      %p124 = por %p122, %p123
      %s125 = ssub.s32 %s32, %s44
      %s126 = ssub.s32 %s33, %s40
      %s127 = sor.u32 %s125, %s126
      %p128 = scmp.eq.s32.totalorder %s127, 0
      %s130 = sadd.s32 %s129, 1
      %s131 = scalar_select %p128, %s129, %s130
      %p134 = pneg %p128
      %p135 = scmp.eq.s32.totalorder %s25, 1
      %p136 = por %p134, %p135
      %p137 = scmp.ne.s32.totalorder %s129, %s132
      %p138 = scmp.eq.s32.totalorder %s25, 0
      %p139 = por %p137, %p138
      %p140 = scmp.ne.s32.totalorder %s129, %s132
      %p141 = scmp.eq.s32.totalorder %s30, 1
      %p142 = por %p140, %p141
      %p143 = scmp.ne.s32.totalorder %s132, %s133
      %p144 = scmp.eq.s32.totalorder %s30, 0
      %p145 = por %p143, %p144
      %p146 = scmp.ne.s32.totalorder %s132, %s133
      %p147 = scmp.eq.s32.totalorder %s31, 1
      %p148 = por %p146, %p147
      %p150 = scmp.ne.s32.totalorder %s133, %s149
      %p151 = scmp.eq.s32.totalorder %s31, 0
      %p152 = por %p150, %p151
      %s154 = sadd.s32 %s153, 1
      %p157 = scmp.eq.s32.totalorder %s25, 1
      %p158 = scmp.ne.s32.totalorder %s153, %s155
      %p159 = scmp.eq.s32.totalorder %s25, 0
      %p160 = por %p158, %p159
      %p161 = scmp.ne.s32.totalorder %s153, %s155
      %p162 = scmp.eq.s32.totalorder %s30, 1
      %p163 = por %p161, %p162
      %p164 = scmp.ne.s32.totalorder %s155, %s156
      %p165 = scmp.eq.s32.totalorder %s30, 0
      %p166 = por %p164, %p165
      %p167 = scmp.ne.s32.totalorder %s155, %s156
      %p168 = scmp.eq.s32.totalorder %s31, 1
      %p169 = por %p167, %p168
      %p171 = scmp.ne.s32.totalorder %s156, %s170
      %p172 = scmp.eq.s32.totalorder %s31, 0
      %p173 = por %p171, %p172
      %s175 = sadd.s32 %s174, 1
      %p178 = scmp.eq.s32.totalorder %s25, 1
      %p179 = scmp.ne.s32.totalorder %s174, %s176
      %p180 = scmp.eq.s32.totalorder %s25, 0
      %p181 = por %p179, %p180
      %p182 = scmp.ne.s32.totalorder %s174, %s176
      %p183 = scmp.eq.s32.totalorder %s30, 1
      %p184 = por %p182, %p183
      %p185 = scmp.ne.s32.totalorder %s176, %s177
      %p186 = scmp.eq.s32.totalorder %s30, 0
      %p187 = por %p185, %p186
      %p188 = scmp.ne.s32.totalorder %s176, %s177
      %p189 = scmp.eq.s32.totalorder %s31, 1
      %p190 = por %p188, %p189
      %p192 = scmp.ne.s32.totalorder %s177, %s191
      %p193 = scmp.eq.s32.totalorder %s31, 0
      %p194 = por %p192, %p193
      %p195 = scmp.le.s32.totalorder 1, %s25
      %p196 = scmp.lt.s32.totalorder %s25, 3
      %p197 = pnand %p195, %p196
      %p198 = pneg %p197
      // Predicated region
      $region9: #{tpu_custom_call.1} parent=5 // pred_check
        _
      $region10: #{tpu_custom_call.1} parent=5 // pred_check_branch
        %200 = sbr.rel (%p197) target = $region12
      $region11: #{tpu_custom_call.1} parent=5 // pred_region
        %s201 = ssub.s32 %s25, 1
      $region12: #{tpu_custom_call.1} parent=5 // pred_fallthru
        _
      %p202 = scmp.lt.s32.totalorder %s25, 2
      // Predicated region
      $region13: #{tpu_custom_call.1} parent=5 // pred_check
        %p203 = pneg %p202
      $region14: #{tpu_custom_call.1} parent=5 // pred_check_branch
        %205 = sbr.rel (%p203) target = $region16
      $region15: #{tpu_custom_call.1} parent=5 // pred_region
        // Predicated region
        $region17: #{tpu_custom_call.1} parent=15 // pred_check
          %p206 = pneg %p57
        $region18: #{tpu_custom_call.1} parent=15 // pred_check_branch
          %208 = sbr.rel (%p206) target = $region20
        $region19: #{tpu_custom_call.1} parent=15 // pred_region
          %s209 = sand.u32 %s47, 1
          %s210 = scalar_lea.sflag [#allocation3], %s209
          %s211 = sand.u32 %s47, 1
          %s212 = smul.addr %s211, 16
          %s213 = scalar_lea.vmem [#allocation2], %s212
          %s215 = ssub.s32 256, 256
          %216 = vsyncadd %s210, %s215
          %s217 = smul.addr %s32, 2
          %s218 = smul.addr %s217, 128
          %s219 = scalar_lea.hbm %s0, %s218
          %s220 = sshll.u32 %s213, 4
          %s221 = int_to_ptr.vmem [resolvable:$true] %s220
          %226 = dma.hbm_to_vmem [thread:$0]  %s219, 256, %s221, %s210, 128, 128, 8
        $region20: #{tpu_custom_call.1} parent=15 // pred_fallthru
          _
        // Predicated region
        $region21: #{tpu_custom_call.1} parent=15 // pred_check
          %p227 = pneg %p85
        $region22: #{tpu_custom_call.1} parent=15 // pred_check_branch
          %229 = sbr.rel (%p227) target = $region24
        $region23: #{tpu_custom_call.1} parent=15 // pred_region
          %s230 = sand.u32 %s75, 1
          %s231 = scalar_lea.sflag [#allocation6], %s230
          %s232 = sand.u32 %s75, 1
          %s233 = smul.addr %s232, 8
          %s234 = scalar_lea.vmem [#allocation5], %s233
          %s235 = smul.u32 2, %s33
          %s237 = ssub.s32 128, 128
          %238 = vsyncadd %s231, %s237
          %s239 = smul.addr %s32, 2
          %s240 = sadd.s32 %s235, %s239
          %s241 = smul.addr %s240, 64
          %s242 = scalar_lea.hbm %s1, %s241
          %s243 = sshll.u32 %s234, 4
          %s244 = int_to_ptr.vmem [resolvable:$true] %s243
          %249 = dma.hbm_to_vmem [thread:$0]  %s242, 128, %s244, %s231, 64, 64, 4
        $region24: #{tpu_custom_call.1} parent=15 // pred_fallthru
          _
      $region16: #{tpu_custom_call.1} parent=5 // pred_fallthru
        _
      %p250 = scmp.le.s32.totalorder 1, %s25
      %p251 = scmp.lt.s32.totalorder %s25, 3
      %p252 = pnand %p250, %p251
      %p253 = pneg %p252
      // Predicated region
      $region25: #{tpu_custom_call.1} parent=5 // pred_check
        _
      $region26: #{tpu_custom_call.1} parent=5 // pred_check_branch
        %255 = sbr.rel (%p252) target = $region28
      $region27: #{tpu_custom_call.1} parent=5 // pred_region
        %s256 = ssub.s32 %s25, 1
        %s257 = sand.u32 %s50, 1
        %s258 = scalar_lea.sflag [#allocation3], %s257
        %s259 = sand.u32 %s50, 1
        %s260 = smul.addr %s259, 16
        %s261 = scalar_lea.vmem [#allocation2], %s260
        // Predicated region
        $region29: #{tpu_custom_call.1} parent=27 // pred_check
          %p262 = pneg %p63
        $region30: #{tpu_custom_call.1} parent=27 // pred_check_branch
          %264 = sbr.rel (%p262) target = $region32
        $region31: #{tpu_custom_call.1} parent=27 // pred_region
          %265 = dma.done %s258, 256
        $region32: #{tpu_custom_call.1} parent=27 // pred_fallthru
          _
        %s266 = sand.u32 %s78, 1
        %s267 = scalar_lea.sflag [#allocation6], %s266
        %s268 = sand.u32 %s78, 1
        %s269 = smul.addr %s268, 8
        %s270 = scalar_lea.vmem [#allocation5], %s269
        // Predicated region
        $region33: #{tpu_custom_call.1} parent=27 // pred_check
          %p271 = pneg %p91
        $region34: #{tpu_custom_call.1} parent=27 // pred_check_branch
          %273 = sbr.rel (%p271) target = $region36
        $region35: #{tpu_custom_call.1} parent=27 // pred_region
          %274 = dma.done %s267, 128
        $region36: #{tpu_custom_call.1} parent=27 // pred_fallthru
          _
        %s275 = sand.u32 %s50, 1
        %s276 = scalar_lea.sflag [#allocation3], %s275
        %s277 = sand.u32 %s50, 1
        %s278 = smul.addr %s277, 16
        %s279 = scalar_lea.vmem [#allocation2], %s278
        %p280 = pneg %p63
        %p281 = pneg %p60
        %s282 = sand.u32 %s78, 1
        %s283 = scalar_lea.sflag [#allocation6], %s282
        %s284 = sand.u32 %s78, 1
        %s285 = smul.addr %s284, 8
        %s286 = scalar_lea.vmem [#allocation5], %s285
        %p287 = pneg %p91
        %p288 = pneg %p88
        %p289 = pneg %p117
        %p290 = pneg %p114
        %s291 = sand.u32 %s104, 1
        %s292 = scalar_lea.sflag [#allocation4], %s291
        %s293 = sand.u32 %s104, 1
        %s294 = smul.addr %s293, 8
        %s295 = scalar_lea.vmem [#allocation7], %s294
        %p296 = pneg %p145
        %p297 = pneg %p142
        %s298 = sand.u32 %s30, 1
        %s299 = scalar_lea.sflag [#allocation9], %s298
        %s300 = sand.u32 %s132, 1
        %s301 = smul.addr %s300, 8
        %s302 = scalar_lea.vmem [#allocation8], %s301
        %p303 = pneg %p166
        %p304 = pneg %p163
        %p305 = pneg %p187
        %p306 = pneg %p184
        %s307 = smul.u32 2, %s35
        %s308 = smul.u32 2, %s35
        %v310 = vld [vmem:[%s261] sm:$0xff]
        %v311 = vld [vmem:[%s261 + $0x8] sm:$0xff]
        %vm312 = vcmp.gt.f32.partialorder %v310, 0.0
        %vm313 = vcmp.gt.f32.partialorder %v311, 0.0
        %v314 = vmin.f32 %v310, 0.0
        %v315 = vmin.f32 %v311, 0.0
        %v316 = vmul.f32 %v314, 1.442695
        %v317 = vpow.pop %v316
        %v318 = vmul.f32 %v315, 1.442695
        %v319 = vpow.pop %v318
        %v320 = vsub.f32 %v317, 1.0
        %v321 = vsub.f32 %v319, 1.0
        %v322 = vsel %vm312, %v310, %v320
        %v323 = vsel %vm313, %v311, %v321
        %v324 = vpack.c.bf16 %v323, %v322
        %v325 = vld [vmem:[%s270] sm:$0xf]
        %v326 = vld [vmem:[%s270 + $0x4] sm:$0xf]
        %v329 = vunpack.c.l.b16 %v325
        %v330 = vunpack.c.l.b16 %v326
        %v331 = vpack.c.b16 %v330, %v329
        %vm332 = vcmask 130048
        %v334 = vsel %vm332, %v331, 0
        %336 = vmatprep.subr.bf16.mxu0 0
        %337 = vmatpush1.bf16.msra.mxu0 0
        %338 = vmatprep.subr.bf16.mxu0 0
        %339 = vmatpush1.bf16.msra.mxu0 0
        %340 = vmatprep.subr.bf16.mxu0 0
        %341 = vmatpush1.bf16.msra.mxu0 0
        %342 = vmatprep.subr.bf16.mxu0 0
        %343 = vmatpush1.bf16.msra.mxu0 0
        %344 = vmatprep.subr.bf16.mxu0 0
        %345 = vmatpush1.bf16.msra.mxu0 0
        %346 = vmatprep.subr.bf16.mxu0 0
        %347 = vmatpush1.bf16.msra.mxu0 0
        %348 = vmatprep.subr.bf16.mxu0 0
        %349 = vmatpush1.bf16.msra.mxu0 0
        %350 = vmatprep.subr.bf16.mxu0 0
        %351 = vmatpush1.bf16.msra.mxu0 %v324
        %352 = vmatprep.subr.bf16.mxu0 0
        %353 = vmatpush2.bf16.msra.mxu0 0
        %354 = vmatprep.subr.bf16.mxu0 0
        %355 = vmatpush2.bf16.msra.mxu0 0
        %356 = vmatprep.subr.bf16.mxu0 0
        %357 = vmatpush2.bf16.msra.mxu0 0
        %358 = vmatprep.subr.bf16.mxu0 0
        %359 = vmatpush2.bf16.msra.mxu0 0
        %360 = vmatprep.subr.bf16.mxu0 0
        %361 = vmatpush2.bf16.msra.mxu0 0
        %362 = vmatprep.subr.bf16.mxu0 0
        %363 = vmatpush2.bf16.msra.mxu0 0
        %364 = vmatprep.subr.bf16.mxu0 0
        %365 = vmatpush2.bf16.msra.mxu0 0
        %366 = vmatprep.subr.bf16.mxu0 0
        %367 = vmatpush2.bf16.msra.mxu0 0
        %368 = vmatprep.mubr.bf16.mxu0 0
        %369 = vmatmul.mubr.bf16.gmra.mxu0 %v334
        %v370 = vpop.f32.mrf.mxu0
        %v371 = vadd.f32 0.0, %v370
        %v372 = vpop.f32.mrf.mxu0
        %v373 = vpop.f32.mrf.mxu0
        %v374 = vadd.f32 0.0, %v373
        %v375 = vpop.f32.mrf.mxu0
        %376 = vdwg.mxu0
        %v377 = vpack.c.bf16 %v374, %v371
        %v379 = vunpack.c.l.b16 %v377
        %v380 = vunpack.c.h.b16 %v377
        %v381 = vpack.c.b16 %v379, %v379
        %v382 = vpack.c.b16 %v380, %v380
        %vm385 = vcmask 257024
        %386 = vst.msk [vmem:[%s302] sm:$0xf] %vm385, %v381
        %387 = vst.msk [vmem:[%s302 + $0x4] sm:$0xf] %vm385, %v382
        %p388 = scmp.eq.s32.totalorder %s34, 0
        %p389 = scmp.eq.s32.totalorder %s35, 0
        %p390 = pnand %p388, %p389
        %p391 = pneg %p390
        // Predicated region
        $region37: #{tpu_custom_call.1} parent=27 // pred_check
          _
        $region38: #{tpu_custom_call.1} parent=27 // pred_check_branch
          %393 = sbr.rel (%p390) target = $region40
        $region39: #{tpu_custom_call.1} parent=27 // pred_region
          %vm394 = vcmask 254976
          %395 = vst.msk [vmem:[#allocation10] sm:$0x3] %vm394, 0.0
          %396 = vst.msk [vmem:[#allocation11] sm:$0x3] %vm394, 0.0
        $region40: #{tpu_custom_call.1} parent=27 // pred_fallthru
          _
        // Predicated region
        $region41: #{tpu_custom_call.1} parent=27 // pred_check
          %p397 = pneg %p389
        $region42: #{tpu_custom_call.1} parent=27 // pred_check_branch
          %399 = sbr.rel (%p397) target = $region44
        $region43: #{tpu_custom_call.1} parent=27 // pred_region
          %v401 = vunpack.c.l.b16 %v324
          %v402 = vunpack.c.h.b16 %v324
          %v403 = vpack.c.b16 %v401, %v401
          %v404 = vpack.c.b16 %v402, %v402
          %407 = vst.msk [vmem:[%s295] sm:$0xf] %vm385, %v403
          %408 = vst.msk [vmem:[%s295 + $0x4] sm:$0xf] %vm385, %v404
          %v409 = vunpack.c.l.bf16 %v324
          %v410 = vunpack.c.h.bf16 %v324
          %v411 = vld [vmem:[#allocation10] sm:$0x3]
          %vm412 = vcmask 261120
          %v413 = vsel %vm412, %v409, 0.0
          %v414 = vsel %vm412, %v410, 0.0
          %v415 = vadd.f32 %v413, %v414
          %v416 = vrot.slane %v415, 4
          %v417 = vadd.f32 %v415, %v416
          %v418 = vrot.slane %v417, 2
          %v419 = vadd.f32 %v417, %v418
          %v420 = vrot.slane %v419, 1
          %v421 = vadd.f32 %v419, %v420
          %v422 = vmul.f32 %v409, %v409
          %v423 = vmul.f32 %v410, %v410
          %v424 = vsel %vm412, %v422, 0.0
          %v425 = vsel %vm412, %v423, 0.0
          %v426 = vadd.f32 %v424, %v425
          %v427 = vrot.slane %v426, 4
          %v428 = vadd.f32 %v426, %v427
          %v429 = vrot.slane %v428, 2
          %v430 = vadd.f32 %v428, %v429
          %v431 = vrot.slane %v430, 1
          %v432 = vadd.f32 %v430, %v431
          %vm433 = vcmask 1040384
          %v434 = vsel %vm433, %v421, %v432
          %v435 = vadd.f32 %v411, %v434
          %vm436 = vcmask 254976
          %437 = vst.msk [vmem:[#allocation10] sm:$0x3] %vm436, %v435
        $region44: #{tpu_custom_call.1} parent=27 // pred_fallthru
          _
        %v438 = vunpack.c.l.bf16 %v377
        %v439 = vunpack.c.h.bf16 %v377
        %v440 = vld [vmem:[#allocation11] sm:$0x3]
        %vm441 = vcmask 261120
        %v442 = vsel %vm441, %v438, 0.0
        %v443 = vsel %vm441, %v439, 0.0
        %v444 = vadd.f32 %v442, %v443
        %v445 = vrot.slane %v444, 4
        %v446 = vadd.f32 %v444, %v445
        %v447 = vrot.slane %v446, 2
        %v448 = vadd.f32 %v446, %v447
        %v449 = vrot.slane %v448, 1
        %v450 = vadd.f32 %v448, %v449
        %v451 = vmul.f32 %v438, %v438
        %v452 = vmul.f32 %v439, %v439
        %v453 = vsel %vm441, %v451, 0.0
        %v454 = vsel %vm441, %v452, 0.0
        %v455 = vadd.f32 %v453, %v454
        %v456 = vrot.slane %v455, 4
        %v457 = vadd.f32 %v455, %v456
        %v458 = vrot.slane %v457, 2
        %v459 = vadd.f32 %v457, %v458
        %v460 = vrot.slane %v459, 1
        %v461 = vadd.f32 %v459, %v460
        %vm462 = vcmask 1040384
        %v463 = vsel %vm462, %v450, %v461
        %v464 = vadd.f32 %v440, %v463
        %vm465 = vcmask 254976
        %466 = vst.msk [vmem:[#allocation11] sm:$0x3] %vm465, %v464
        %s467 = sand.u32 %s104, 1
        %s468 = scalar_lea.sflag [#allocation4], %s467
        %s469 = sand.u32 %s104, 1
        %s470 = smul.addr %s469, 8
        %s471 = scalar_lea.vmem [#allocation7], %s470
        %s472 = sand.u32 %s30, 1
        %s473 = scalar_lea.sflag [#allocation9], %s472
        %s474 = sand.u32 %s132, 1
        %s475 = smul.addr %s474, 8
        %s476 = scalar_lea.vmem [#allocation8], %s475
        // Predicated region
        $region45: #{tpu_custom_call.1} parent=27 // pred_check
          %p477 = pneg %p114
        $region46: #{tpu_custom_call.1} parent=27 // pred_check_branch
          %479 = sbr.rel (%p477) target = $region48
        $region47: #{tpu_custom_call.1} parent=27 // pred_region
          %s481 = ssub.s32 128, 128
          %482 = vsyncadd %s468, %s481
          %s483 = smul.addr %s34, 2
          %s484 = smul.addr %s483, 64
          %s485 = scalar_lea.hbm %s2, %s484
          %s486 = sshll.u32 %s471, 4
          %s487 = int_to_ptr.vmem [resolvable:$true] %s486
          %492 = dma.vmem_to_hbm [thread:$0]  %s487, 128, %s485, %s468, 64, 64, 4
        $region48: #{tpu_custom_call.1} parent=27 // pred_fallthru
          _
        // Predicated region
        $region49: #{tpu_custom_call.1} parent=27 // pred_check
          %p493 = pneg %p142
        $region50: #{tpu_custom_call.1} parent=27 // pred_check_branch
          %495 = sbr.rel (%p493) target = $region52
        $region51: #{tpu_custom_call.1} parent=27 // pred_region
          %s496 = smul.u32 2, %s35
          %s498 = ssub.s32 128, 128
          %499 = vsyncadd %s473, %s498
          %s500 = smul.addr %s34, 2
          %s501 = sadd.s32 %s496, %s500
          %s502 = smul.addr %s501, 64
          %s503 = scalar_lea.hbm %s3, %s502
          %s504 = sshll.u32 %s476, 4
          %s505 = int_to_ptr.vmem [resolvable:$true] %s504
          %510 = dma.vmem_to_hbm [thread:$0]  %s505, 128, %s503, %s473, 64, 64, 4
        $region52: #{tpu_custom_call.1} parent=27 // pred_fallthru
          _
        // Predicated region
        $region53: #{tpu_custom_call.1} parent=27 // pred_check
          %p511 = pneg %p163
        $region54: #{tpu_custom_call.1} parent=27 // pred_check_branch
          %513 = sbr.rel (%p511) target = $region56
        $region55: #{tpu_custom_call.1} parent=27 // pred_region
          %s515 = ssub.s32 32, 32
          %516 = vsyncadd [#allocation9], %s515
          %s518 = sshll.u32 [#allocation10], 4
          %s519 = int_to_ptr.vmem [resolvable:$true] %s518
          %521 = dma.vmem_to_hbm [thread:$0]  %s519, 32, %s4, [#allocation9]
        $region56: #{tpu_custom_call.1} parent=27 // pred_fallthru
          _
        // Predicated region
        $region57: #{tpu_custom_call.1} parent=27 // pred_check
          %p522 = pneg %p184
        $region58: #{tpu_custom_call.1} parent=27 // pred_check_branch
          %524 = sbr.rel (%p522) target = $region60
        $region59: #{tpu_custom_call.1} parent=27 // pred_region
          %s526 = ssub.s32 32, 32
          %527 = vsyncadd [#allocation12], %s526
          %s529 = sshll.u32 [#allocation11], 4
          %s530 = int_to_ptr.vmem [resolvable:$true] %s529
          %532 = dma.vmem_to_hbm [thread:$0]  %s530, 32, %s5, [#allocation12]
        $region60: #{tpu_custom_call.1} parent=27 // pred_fallthru
          _
        // Predicated region
        $region61: #{tpu_custom_call.1} parent=27 // pred_check
          %p533 = pneg %p163
        $region62: #{tpu_custom_call.1} parent=27 // pred_check_branch
          %535 = sbr.rel (%p533) target = $region64
        $region63: #{tpu_custom_call.1} parent=27 // pred_region
          %536 = dma.done [#allocation9], 32
        $region64: #{tpu_custom_call.1} parent=27 // pred_fallthru
          _
        // Predicated region
        $region65: #{tpu_custom_call.1} parent=27 // pred_check
          %p537 = pneg %p184
        $region66: #{tpu_custom_call.1} parent=27 // pred_check_branch
          %539 = sbr.rel (%p537) target = $region68
        $region67: #{tpu_custom_call.1} parent=27 // pred_region
          %540 = dma.done [#allocation12], 32
        $region68: #{tpu_custom_call.1} parent=27 // pred_fallthru
          _
      $region28: #{tpu_custom_call.1} parent=5 // pred_fallthru
        _
      %p541 = scmp.le.s32.totalorder 2, %s25
      // Predicated region
      $region69: #{tpu_custom_call.1} parent=5 // pred_check
        %p542 = pneg %p541
      $region70: #{tpu_custom_call.1} parent=5 // pred_check_branch
        %544 = sbr.rel (%p542) target = $region72
      $region71: #{tpu_custom_call.1} parent=5 // pred_region
        %s545 = ssub.s32 %s25, 2
        // Predicated region
        $region73: #{tpu_custom_call.1} parent=71 // pred_check
          %p546 = pneg %p120
        $region74: #{tpu_custom_call.1} parent=71 // pred_check_branch
          %548 = sbr.rel (%p546) target = $region76
        $region75: #{tpu_custom_call.1} parent=71 // pred_region
          %s549 = sand.u32 %s105, 1
          %s550 = scalar_lea.sflag [#allocation4], %s549
          %s551 = sand.u32 %s105, 1
          %s552 = smul.addr %s551, 8
          %s553 = scalar_lea.vmem [#allocation7], %s552
          %554 = dma.done %s550, 128
        $region76: #{tpu_custom_call.1} parent=71 // pred_fallthru
          _
        // Predicated region
        $region77: #{tpu_custom_call.1} parent=71 // pred_check
          %p555 = pneg %p148
        $region78: #{tpu_custom_call.1} parent=71 // pred_check_branch
          %557 = sbr.rel (%p555) target = $region80
        $region79: #{tpu_custom_call.1} parent=71 // pred_region
          %s558 = sand.u32 %s31, 1
          %s559 = scalar_lea.sflag [#allocation9], %s558
          %s560 = sand.u32 %s133, 1
          %s561 = smul.addr %s560, 8
          %s562 = scalar_lea.vmem [#allocation8], %s561
          %563 = dma.done %s559, 128
        $region80: #{tpu_custom_call.1} parent=71 // pred_fallthru
          _
      $region72: #{tpu_custom_call.1} parent=5 // pred_fallthru
        _
    $region6: #{tpu_custom_call.1} parent=1 // loop_footer
      %s29 = sadd.s32 1, %s25
    $region7: #{tpu_custom_call.1} parent=1 // loop_footer_branch
      %24 = sbr.rel target = $region3
    $region8: #{tpu_custom_call.1} parent=1 // loop_exit
      _
    %564 = vsyncpa [#allocation3], 1
    %s565 = scalar_lea.sflag [#allocation3], 1
    %566 = vsyncpa %s565, 1
    %567 = vsyncpa [#allocation6], 1
    %s568 = scalar_lea.sflag [#allocation6], 1
    %569 = vsyncpa %s568, 1
    %570 = vsyncpa [#allocation4], 1
    %s571 = scalar_lea.sflag [#allocation4], 1
    %572 = vsyncpa %s571, 1
    %573 = vsyncpa [#allocation9], 1
    %s574 = scalar_lea.sflag [#allocation9], 1
    %575 = vsyncpa %s574, 1
    %576 = vsyncpa [#allocation12], 1

</llo_original>
